<compile_context>
chip_gen: v6e
topology: v6e:2x2x1
jax: 0.10.0
libtpu: 0.0.40
codegen_flags: <defaults>
</compile_context>

<pallas_src>
import functools

import jax
import jax.numpy as jnp
from jax.experimental import pallas as pl
from jax.experimental.pallas import tpu as pltpu

_BIG = 1e30  # sentinel baked into padded rows/cols so they never win the min


def _round_up(x: int, m: int) -> int:
    return (x + m - 1) // m * m


def _logits_tile_kernel(a_ref, b_ref, p_ref, out_ref, *,
                        ti, tj, r_pad, s_pad, s_chunk):
    """Compute logits for a (ti, tj) tile of batch pairs.

    a_ref  : (ti*r_pad, Dp) f32 augmented A rows  [-2a | ||a||^2 | 1 | 0...]
    b_ref  : (tj*s_pad, Dp) f32 augmented B rows  [ b  | 1 | ||b||^2 | 0...]
    p_ref  : (1, 1) f32 dist_param (SMEM)
    out_ref: (ti, 128) f32 dense logits block; valid region [:ti, :tj]
    """
    a = a_ref[...]                                            # (MI, Dp)
    dp = p_ref[0, 0]
    scale = 5.0 * dp
    neg_scale2 = -(scale * scale)

    lane_iota = jax.lax.broadcasted_iota(jnp.int32, (1, out_ref.shape[1]), 1)
    acc = jnp.zeros(out_ref.shape, jnp.float32)               # (ti, 128)

    for u in range(tj):                       # static unrolled loop (tj small)
        run_min = None
        s0 = 0
        while s0 < s_pad:                     # chunk S to bound vreg pressure
            w = min(s_chunk, s_pad - s0)
            b_c = b_ref[pl.ds(u * s_pad + s0, w), :]          # (w, Dp), static slice
            # ONE MXU matmul -> squared distances: ||a||^2 + ||b||^2 - 2 a.b
            d2 = jax.lax.dot_general(
                a, b_c, (((1,), (1,)), ((), ())),
                preferred_element_type=jnp.float32)           # (MI, w)
            d2 = d2.reshape(ti, r_pad, w)                      # free leading split
            m = jnp.min(d2, axis=1)                            # (ti, w) sublane-group min
            m = jnp.min(m, axis=1, keepdims=True)              # (ti, 1) lane min
            run_min = m if run_min is None else jnp.minimum(run_min, m)
            s0 += w
        run_min = jnp.maximum(run_min, 0.0)                    # guard tiny negatives
        acc = acc + jnp.where(lane_iota == u, run_min, 0.0)    # place column u

    # sqrt/square cancel: logit = -(sqrt(min_d2) * 5*p)^2 = -min_d2 * (5*p)^2
    out_ref[...] = acc * neg_scale2            # single lane-dense, unmasked store


def _augment_a(a, r_pad, dp_tot):
    """[-2a | ||a||^2 | 1], pad rows carry +BIG in the norm column."""
    B, R, D = a.shape
    n2 = jnp.sum(a * a, axis=-1, keepdims=True)
    ones = jnp.ones((B, R, 1), jnp.float32)
    core = jnp.concatenate([-2.0 * a, n2, ones], axis=-1)      # (B, R, D+2)
    if r_pad > R:
        pad_row = jnp.concatenate(
            [jnp.zeros((D,), jnp.float32), jnp.array([_BIG, 1.0], jnp.float32)])
        pad = jnp.broadcast_to(pad_row, (B, r_pad - R, D + 2))
        core = jnp.concatenate([core, pad], axis=1)
    return jnp.pad(core, ((0, 0), (0, 0), (0, dp_tot - (D + 2))))


def _augment_b(b, s_pad, dp_tot):
    """[b | 1 | ||b||^2], pad rows carry +BIG in the norm column."""
    B, S, D = b.shape
    n2 = jnp.sum(b * b, axis=-1, keepdims=True)
    ones = jnp.ones((B, S, 1), jnp.float32)
    core = jnp.concatenate([b, ones, n2], axis=-1)             # (B, S, D+2)
    if s_pad > S:
        pad_row = jnp.concatenate(
            [jnp.zeros((D,), jnp.float32), jnp.array([1.0, _BIG], jnp.float32)])
        pad = jnp.broadcast_to(pad_row, (B, s_pad - S, D + 2))
        core = jnp.concatenate([core, pad], axis=1)
    return jnp.pad(core, ((0, 0), (0, 0), (0, dp_tot - (D + 2))))


@jax.jit
def emb_cross_prob_loss(emb_a, emb_b, dist_param):
    """Pallas equivalent of EmbCrossProbLossModel.forward.

    emb_a: (B, num_rk, D), emb_b: (B, num_sk, D), dist_param: (1, 1).
    Returns scalar f32 loss.
    """
    B, R, D = emb_a.shape
    Bb, S, Db = emb_b.shape
    assert B == Bb and D == Db
    assert R >= 1 and S >= 1 and B >= 1

    r_pad = _round_up(R, 8)
    s_pad = _round_up(S, 128)
    dp_tot = _round_up(D + 2, 128)        # 2 extra columns hold the norm trick

    # ---- tile-size heuristics ------------------------------------------
    # i-tile: multiple of 8 batches per step (natively aligned output block),
    # targeting ~256 MXU rows.  j-tile: bounded so b block / output stay modest.
    ti = max(8, (256 // r_pad) // 8 * 8)
    ti = min(ti, _round_up(B, 8))
    tj = max(1, min(B, 128, 2048 // s_pad))
    gi = pl.cdiv(B, ti)
    gj = pl.cdiv(B, tj)
    # Keep >= 2 grid steps when possible (v7x has 2 TensorCores).
    while gi * gj < 2 and tj > 1:
        tj = max(1, tj // 2)
        gj = pl.cdiv(B, tj)
    while gi * gj < 2 and ti > 8:
        ti = _round_up(max(8, ti // 2), 8)
        gi = pl.cdiv(B, ti)

    mi = ti * r_pad
    nj = tj * s_pad
    s_chunk = min(s_pad, 512)

    # ---- wrapper-side packing (one-time, cheap XLA ops) ------------------
    a_aug = _augment_a(emb_a.astype(jnp.float32), r_pad, dp_tot)  # (B, r_pad, Dp)
    b_aug = _augment_b(emb_b.astype(jnp.float32), s_pad, dp_tot)  # (B, s_pad, Dp)
    # Pad batch dims to tile multiples with zeros (their logits are sliced off).
    a_aug = jnp.pad(a_aug, ((0, gi * ti - B), (0, 0), (0, 0)))
    b_aug = jnp.pad(b_aug, ((0, gj * tj - B), (0, 0), (0, 0)))
    a_aug = a_aug.reshape(gi * ti * r_pad, dp_tot)
    b_aug = b_aug.reshape(gj * tj * s_pad, dp_tot)
    p = dist_param.reshape(1, 1).astype(jnp.float32)

    kernel = functools.partial(
        _logits_tile_kernel, ti=ti, tj=tj, r_pad=r_pad, s_pad=s_pad,
        s_chunk=s_chunk)

    # VMEM budget from actual tile bytes (double-buffered inputs + Gram chunk).
    a_blk_bytes = mi * dp_tot * 4
    b_blk_bytes = nj * dp_tot * 4
    out_blk_bytes = ti * 128 * 4
    gram_bytes = mi * s_chunk * 4
    vmem_bytes = 2 * (a_blk_bytes + b_blk_bytes + out_blk_bytes + gram_bytes) + (4 << 20)
    vmem_limit = int(min(max(vmem_bytes, 32 << 20), 48 << 20))

    # Give the LARGER operand block the "revisit / skip-DMA" benefit by keying
    # it to the outer grid axis.
    if b_blk_bytes >= a_blk_bytes:
        grid = (gj, gi)
        a_spec = pl.BlockSpec((mi, dp_tot), lambda j, i: (i, 0))
        b_spec = pl.BlockSpec((nj, dp_tot), lambda j, i: (j, 0))
        o_spec = pl.BlockSpec((ti, 128), lambda j, i: (i, j))
    else:
        grid = (gi, gj)
        a_spec = pl.BlockSpec((mi, dp_tot), lambda i, j: (i, 0))
        b_spec = pl.BlockSpec((nj, dp_tot), lambda i, j: (j, 0))
        o_spec = pl.BlockSpec((ti, 128), lambda i, j: (i, j))

    flops = 2 * gi * gj * mi * nj * dp_tot
    bytes_accessed = 4 * (gi * gj * (mi + nj) * dp_tot + gi * ti * gj * 128 + 1)

    out = pl.pallas_call(
        kernel,
        out_shape=jax.ShapeDtypeStruct((gi * ti, gj * 128), jnp.float32),
        grid=grid,
        in_specs=[a_spec, b_spec, pl.BlockSpec(memory_space=pltpu.SMEM)],
        out_specs=o_spec,
        compiler_params=pltpu.CompilerParams(
            dimension_semantics=("parallel", "parallel"),
            vmem_limit_bytes=vmem_limit),
        cost_estimate=pl.CostEstimate(
            flops=flops, transcendentals=0, bytes_accessed=bytes_accessed),
    )(a_aug, b_aug, p)

    # Extract the dense (B, B) logits from the per-step (ti, 128) blocks.
    logits = out.reshape(gi, ti, gj, 128)[:, :, :, :tj]
    logits = logits.reshape(gi * ti, gj * tj)[:B, :B]

    # Tiny symmetric cross-entropy with labels = arange(B) (wrapper-side).
    diag = jnp.diagonal(logits)
    lse_rows = jax.nn.logsumexp(logits, axis=1)
    lse_cols = jax.nn.logsumexp(logits, axis=0)
    return 0.5 * (jnp.mean(lse_rows - diag) + jnp.mean(lse_cols - diag))


def _reference(emb_a, emb_b, dist_param):
    """Pure-JAX reference matching the PyTorch forward."""
    B, R, D = emb_a.shape
    S = emb_b.shape[1]
    a = emb_a.reshape(B * R, D)
    b = emb_b.reshape(B * S, D)
    diff = a[:, None, :] - b[None, :, :]
    c_dist = jnp.sqrt(jnp.maximum(jnp.sum(diff * diff, axis=-1), 0.0))
    c_dist = c_dist.reshape(B, R, B, S)
    c_dist = jnp.min(c_dist, axis=1)
    c_dist = jnp.min(c_dist, axis=2)
    logits = -jnp.square(c_dist * (5.0 * dist_param[0, 0]))
    labels = jnp.arange(B)

    def ce(lg):
        lse = jax.nn.logsumexp(lg, axis=1)
        return jnp.mean(lse - lg[jnp.arange(B), labels])

    return (ce(logits) + ce(logits.T)) / 2.0


if __name__ == "__main__":
    key = jax.random.PRNGKey(0)
    k_a, k_b = jax.random.split(key)

    B, num_rk, num_sk, D = 2, 8, 8, 32
    emb_a = jax.random.normal(k_a, (B, num_rk, D), dtype=jnp.float32)
    emb_b = jax.random.normal(k_b, (B, num_sk, D), dtype=jnp.float32)
    # nn.Parameter(torch.ones((1, 1))) -> deterministic ones init.
    dist_param = jnp.ones((1, 1), dtype=jnp.float32)

    loss = emb_cross_prob_loss(emb_a, emb_b, dist_param)
    loss = jax.block_until_ready(loss)

    ref = _reference(emb_a, emb_b, dist_param)
    assert jnp.allclose(loss, ref, rtol=1e-3, atol=1e-3), (loss, ref)

    print("KERNEL_OK")
</pallas_src>

<mosaic_0001>
module attributes {stable_mosaic.version = 11 : i64} {
  func.func @_logits_tile_kernel(%arg0: i32, %arg1: i32, %arg2: memref<64x128xf32, #tpu.memory_space<vmem>>, %arg3: memref<128x128xf32, #tpu.memory_space<vmem>>, %arg4: memref<1x1xf32, #tpu.memory_space<smem>>, %arg5: memref<8x128xf32, #tpu.memory_space<vmem>>) attributes {dimension_semantics = [#tpu.dimension_semantics<parallel>, #tpu.dimension_semantics<parallel>], iteration_bounds = array<i64: 2, 1>, scalar_prefetch = 0 : i64, scratch_operands = 0 : i64, tpu.core_type = #tpu.core_type<tc>, window_params = [{transform_indices = @transform_0, window_bounds = array<i64: 64, 128>}, {transform_indices = @transform_1, window_bounds = array<i64: 128, 128>}, {transform_indices = @transform_2, window_bounds = array<i64: 1, 1>}, {transform_indices = @transform_3, window_bounds = array<i64: 8, 128>}]} {
    %c0 = arith.constant 0 : index
    %c0_0 = arith.constant 0 : index
    %0 = vector.load %arg2[%c0, %c0_0] : memref<64x128xf32, #tpu.memory_space<vmem>>, vector<64x128xf32>
    %c0_1 = arith.constant 0 : index
    %c0_2 = arith.constant 0 : index
    %1 = memref.load %arg4[%c0_1, %c0_2] : memref<1x1xf32, #tpu.memory_space<smem>>
    %cst = arith.constant 5.000000e+00 : f32
    %2 = arith.mulf %cst, %1 : f32
    %3 = arith.mulf %2, %2 : f32
    %cst_3 = arith.constant 0.000000e+00 : f32
    %4 = arith.subf %cst_3, %3 : f32
    %5 = tpu.iota {dimensions = array<i32: 1>} : vector<1x128xi32>
    %cst_4 = arith.constant 0.000000e+00 : f32
    %6 = vector.broadcast %cst_4 : f32 to vector<8x128xf32>
    %c0_5 = arith.constant 0 : index
    %c0_6 = arith.constant 0 : index
    %7 = vector.load %arg3[%c0_5, %c0_6] : memref<128x128xf32, #tpu.memory_space<vmem>>, vector<128x128xf32>
    %cst_7 = arith.constant dense<0.000000e+00> : vector<64x128xf32>
    %8 = tpu.matmul %0, %7, %cst_7 {dimension_numbers = #tpu.dot_dimension_numbers<[1], [1], [0], [0], [0, 0, 1, 0], [], []>} : vector<64x128xf32>, vector<128x128xf32>, vector<64x128xf32> -> vector<64x128xf32>
    %9 = vector.shape_cast %8 : vector<64x128xf32> to vector<8x8x128xf32>
    %cst_8 = arith.constant dense<0x7F800000> : vector<8x128xf32>
    %10 = vector.multi_reduction <minimumf>, %9, %cst_8 [1] : vector<8x8x128xf32> to vector<8x128xf32>
    %cst_9 = arith.constant dense<0x7F800000> : vector<8xf32>
    %11 = vector.multi_reduction <minimumf>, %10, %cst_9 [1] : vector<8x128xf32> to vector<8xf32>
    %12 = vector.shape_cast %11 : vector<8xf32> to vector<8x1xf32>
    %cst_10 = arith.constant 0.000000e+00 : f32
    %13 = vector.broadcast %cst_10 : f32 to vector<8x1xf32>
    %14 = arith.maximumf %12, %13 : vector<8x1xf32>
    %c0_i32 = arith.constant 0 : i32
    %15 = vector.broadcast %c0_i32 : i32 to vector<1x128xi32>
    %16 = arith.cmpi eq, %5, %15 : vector<1x128xi32>
    %cst_11 = arith.constant 0.000000e+00 : f32
    %17 = vector.shape_cast %16 : vector<1x128xi1> to vector<1x128xi1>
    %18 = vector.broadcast %17 : vector<1x128xi1> to vector<8x128xi1>
    %19 = vector.shape_cast %14 : vector<8x1xf32> to vector<8x1xf32>
    %20 = vector.broadcast %19 : vector<8x1xf32> to vector<8x128xf32>
    %21 = vector.broadcast %cst_11 : f32 to vector<8x128xf32>
    %22 = arith.select %18, %20, %21 : vector<8x128xi1>, vector<8x128xf32>
    %23 = arith.addf %6, %22 : vector<8x128xf32>
    %24 = vector.broadcast %4 : f32 to vector<8x128xf32>
    %25 = arith.mulf %23, %24 : vector<8x128xf32>
    %c0_12 = arith.constant 0 : index
    %c0_13 = arith.constant 0 : index
    %26 = vector.load %arg5[%c0_12, %c0_13] : memref<8x128xf32, #tpu.memory_space<vmem>>, vector<8x128xf32>
    tpu.vector_store %arg5[%c0_12, %c0_13], %25 {strides = array<i32>} : memref<8x128xf32, #tpu.memory_space<vmem>>, vector<8x128xf32>,
    return
  }
  func.func @transform_0(%arg0: i32, %arg1: i32) -> (i32, i32) {
    %c0_i32 = arith.constant 0 : i32
    %c0_i32_0 = arith.constant 0 : i32
    return %arg1, %c0_i32 : i32, i32
  }
  func.func @transform_1(%arg0: i32, %arg1: i32) -> (i32, i32) {
    %c0_i32 = arith.constant 0 : i32
    %c0_i32_0 = arith.constant 0 : i32
    return %arg0, %c0_i32 : i32, i32
  }
  func.func @transform_2(%arg0: i32, %arg1: i32) -> (i32, i32) {
    %c0_i32 = arith.constant 0 : i32
    %c0_i32_0 = arith.constant 0 : i32
    %c0_i32_1 = arith.constant 0 : i32
    return %c0_i32, %c0_i32_0 : i32, i32
  }
  func.func @transform_3(%arg0: i32, %arg1: i32) -> (i32, i32) {
    %c0_i32 = arith.constant 0 : i32
    return %arg1, %arg0 : i32, i32
  }
}

</mosaic_0001>

<llo_original>
// kernel: emb_cross_prob_loss.1
$region0: #{emb_cross_prob_loss.1}
  #allocation0 [shape = 'u32[]', space=smem, size = 0x4, offset = 0x4, fixed_abs, tag = 'smem constant byte address 0x4 - core index']
  #allocation1 [shape = 'u32[144,128]{1,0:T(1,128)}', space=vmem, size = 0x12000, scoped, tag = 'internal scratch']
  #allocation2 [shape = 'f32[1,1]{1,0:T(1,128)S(6)}', space=smem, size = 0x200, scoped, tag = 'scoped memory for emb_cross_prob_loss.1']
  %s0 = inlined_call_operand.vmem [shape: f32[64,128], index: 0, kind: input, shape index: {}]
  %s1 = inlined_call_operand.vmem [shape: f32[256,128], index: 1, kind: input, shape index: {}]
  %s2 = inlined_call_operand.<no memory space> [shape: f32[1,1], index: 2, kind: input, shape index: {}]
  %s3 = inlined_call_operand.vmem [shape: f32[8,256], index: 3, kind: output, shape index: {}]
  %s4 = sld [smem:[#allocation0]]
  $region45: #{emb_cross_prob_loss.1} parent=0
    _
  %s6 = ssub.s32 1, %s4
  %s7 = scalar_select 0, %s6, %s4
  %8 = sst [smem:[#allocation2]] %s2
  loop: start=0, step=1, limit=4
  $region2: #{emb_cross_prob_loss.1} parent=0 // loop_pre_header
    _
  $region3: #{emb_cross_prob_loss.1} parent=0 // loop_header
    %s10 = sphi 0, %s14
    %p11 = scmp.ge.s32.totalorder %s10, 4
    %s17 = sphi 0, %s29
    %s18 = sphi 0, %s25
    %s19 = sphi 0, %s17
    %s20 = sphi 0, %s18
    %s21 = sphi 0, %s19
    %s22 = sphi 0, %s20
    %s32 = sphi 0, %s34
    %s35 = sphi 0, %s32
    %s36 = sphi 0, %s35
    %s52 = sphi 0, %s36
    %s58 = sphi 0, %s60
    %s61 = sphi 0, %s58
    %s62 = sphi 0, %s61
    %s78 = sphi 0, %s62
    %s82 = sphi 0, %s82
    %s84 = sphi 0, %s82
    %s85 = sphi 0, %s84
    %s99 = sphi 0, %s85
    %s107 = sphi 0, %s109
    %s110 = sphi 0, %s107
    %s111 = sphi 0, %s110
    %s127 = sphi 0, %s111
  $region4: #{emb_cross_prob_loss.1} parent=0 // loop_header_branch
    %13 = sbr.rel (%p11) target = $region8
  $region5: #{emb_cross_prob_loss.1} parent=0 // loop_body
    %s15 = ssub.s32 %s10, 1
    %s16 = ssub.s32 %s10, 2
    %s23 = sadd.s32 1, %s18
    %p24 = scmp.ge.s32.totalorder %s23, 1
    %s25 = scalar_select %p24, 0, %s23
    %s26 = sadd.s32 1, %s17
    %s27 = scalar_select %p24, %s26, %s17
    %p28 = scmp.ge.s32.totalorder %s27, 2
    %s29 = scalar_select %p28, 0, %s27
    %s30 = ssub.s32 %s18, %s25
    %p31 = scmp.eq.s32.totalorder %s30, 0
    %s33 = sadd.s32 %s32, 1
    %s34 = scalar_select %p31, %s32, %s33
    %p37 = pneg %p31
    %p38 = scmp.eq.s32.totalorder %s10, 1
    %p39 = por %p37, %p38
    %p40 = scmp.ne.s32.totalorder %s32, %s35
    %p41 = scmp.eq.s32.totalorder %s10, 0
    %p42 = por %p40, %p41
    %p43 = scmp.ne.s32.totalorder %s32, %s35
    %p44 = scmp.eq.s32.totalorder %s15, 1
    %p45 = por %p43, %p44
    %p46 = scmp.ne.s32.totalorder %s35, %s36
    %p47 = scmp.eq.s32.totalorder %s15, 0
    %p48 = por %p46, %p47
    %p49 = scmp.ne.s32.totalorder %s35, %s36
    %p50 = scmp.eq.s32.totalorder %s16, 1
    %p51 = por %p49, %p50
    %p53 = scmp.ne.s32.totalorder %s36, %s52
    %p54 = scmp.eq.s32.totalorder %s16, 0
    %p55 = por %p53, %p54
    %s56 = ssub.s32 %s17, %s29
    %p57 = scmp.eq.s32.totalorder %s56, 0
    %s59 = sadd.s32 %s58, 1
    %s60 = scalar_select %p57, %s58, %s59
    %p63 = pneg %p57
    %p64 = scmp.eq.s32.totalorder %s10, 1
    %p65 = por %p63, %p64
    %p66 = scmp.ne.s32.totalorder %s58, %s61
    %p67 = scmp.eq.s32.totalorder %s10, 0
    %p68 = por %p66, %p67
    %p69 = scmp.ne.s32.totalorder %s58, %s61
    %p70 = scmp.eq.s32.totalorder %s15, 1
    %p71 = por %p69, %p70
    %p72 = scmp.ne.s32.totalorder %s61, %s62
    %p73 = scmp.eq.s32.totalorder %s15, 0
    %p74 = por %p72, %p73
    %p75 = scmp.ne.s32.totalorder %s61, %s62
    %p76 = scmp.eq.s32.totalorder %s16, 1
    %p77 = por %p75, %p76
    %p79 = scmp.ne.s32.totalorder %s62, %s78
    %p80 = scmp.eq.s32.totalorder %s16, 0
    %p81 = por %p79, %p80
    %s83 = sadd.s32 %s82, 1
    %p86 = scmp.eq.s32.totalorder %s10, 1
    %p87 = scmp.ne.s32.totalorder %s82, %s84
    %p88 = scmp.eq.s32.totalorder %s10, 0
    %p89 = por %p87, %p88
    %p90 = scmp.ne.s32.totalorder %s82, %s84
    %p91 = scmp.eq.s32.totalorder %s15, 1
    %p92 = por %p90, %p91
    %p93 = scmp.ne.s32.totalorder %s84, %s85
    %p94 = scmp.eq.s32.totalorder %s15, 0
    %p95 = por %p93, %p94
    %p96 = scmp.ne.s32.totalorder %s84, %s85
    %p97 = scmp.eq.s32.totalorder %s16, 1
    %p98 = por %p96, %p97
    %p100 = scmp.ne.s32.totalorder %s85, %s99
    %p101 = scmp.eq.s32.totalorder %s16, 0
    %p102 = por %p100, %p101
    %s103 = ssub.s32 %s18, %s25
    %s104 = ssub.s32 %s17, %s29
    %s105 = sor.u32 %s103, %s104
    %p106 = scmp.eq.s32.totalorder %s105, 0
    %s108 = sadd.s32 %s107, 1
    %s109 = scalar_select %p106, %s107, %s108
    %p112 = pneg %p106
    %p113 = scmp.eq.s32.totalorder %s10, 1
    %p114 = por %p112, %p113
    %p115 = scmp.ne.s32.totalorder %s107, %s110
    %p116 = scmp.eq.s32.totalorder %s10, 0
    %p117 = por %p115, %p116
    %p118 = scmp.ne.s32.totalorder %s107, %s110
    %p119 = scmp.eq.s32.totalorder %s15, 1
    %p120 = por %p118, %p119
    %p121 = scmp.ne.s32.totalorder %s110, %s111
    %p122 = scmp.eq.s32.totalorder %s15, 0
    %p123 = por %p121, %p122
    %p124 = scmp.ne.s32.totalorder %s110, %s111
    %p125 = scmp.eq.s32.totalorder %s16, 1
    %p126 = por %p124, %p125
    %p128 = scmp.ne.s32.totalorder %s111, %s127
    %p129 = scmp.eq.s32.totalorder %s16, 0
    %p130 = por %p128, %p129
    %p131 = scmp.le.s32.totalorder 1, %s10
    %p132 = scmp.lt.s32.totalorder %s10, 3
    %p133 = pnand %p131, %p132
    %p134 = pneg %p133
    // Predicated region
    $region9: #{emb_cross_prob_loss.1} parent=5 // pred_check
      _
    $region10: #{emb_cross_prob_loss.1} parent=5 // pred_check_branch
      %136 = sbr.rel (%p133) target = $region12
    $region11: #{emb_cross_prob_loss.1} parent=5 // pred_region
      %s137 = ssub.s32 %s10, 1
      // Predicated region
      $region13: #{emb_cross_prob_loss.1} parent=11 // pred_check
        %p138 = pneg %p48
      $region14: #{emb_cross_prob_loss.1} parent=11 // pred_check_branch
        %140 = sbr.rel (%p138) target = $region16
      $region15: #{emb_cross_prob_loss.1} parent=11 // pred_region
        %s141 = smul.u32 8, %s20
        %p142 = scmp.lt.s32.totalorder %s141, 7
        %s143 = scalar_select %p142, %s141, 7
        %s144 = smul.addr %s143, 8
        %s145 = scalar_lea.vmem %s0, %s144
        %s146 = smul.u32 8, %s20
      $region16: #{emb_cross_prob_loss.1} parent=11 // pred_fallthru
        _
      // Predicated region
      $region17: #{emb_cross_prob_loss.1} parent=11 // pred_check
        %p147 = pneg %p95
      $region18: #{emb_cross_prob_loss.1} parent=11 // pred_check_branch
        %149 = sbr.rel (%p147) target = $region20
      $region19: #{emb_cross_prob_loss.1} parent=11 // pred_region
        _
      $region20: #{emb_cross_prob_loss.1} parent=11 // pred_fallthru
        _
    $region12: #{emb_cross_prob_loss.1} parent=5 // pred_fallthru
      _
    %p150 = scmp.lt.s32.totalorder %s10, 2
    // Predicated region
    $region21: #{emb_cross_prob_loss.1} parent=5 // pred_check
      %p151 = pneg %p150
    $region22: #{emb_cross_prob_loss.1} parent=5 // pred_check_branch
      %153 = sbr.rel (%p151) target = $region24
    $region23: #{emb_cross_prob_loss.1} parent=5 // pred_region
      // Predicated region
      $region25: #{emb_cross_prob_loss.1} parent=23 // pred_check
        %p154 = pneg %p68
      $region26: #{emb_cross_prob_loss.1} parent=23 // pred_check_branch
        %156 = sbr.rel (%p154) target = $region28
      $region27: #{emb_cross_prob_loss.1} parent=23 // pred_region
        %s157 = smul.u32 16, %s17
        %p158 = scmp.lt.s32.totalorder %s157, 31
        %s159 = scalar_select %p158, %s157, 31
        %s160 = smul.addr %s159, 8
        %s161 = scalar_lea.vmem %s1, %s160
        %s162 = smul.u32 16, %s17
      $region28: #{emb_cross_prob_loss.1} parent=23 // pred_fallthru
        _
    $region24: #{emb_cross_prob_loss.1} parent=5 // pred_fallthru
      _
    %p163 = scmp.le.s32.totalorder 1, %s10
    %p164 = scmp.lt.s32.totalorder %s10, 3
    %p165 = pnand %p163, %p164
    %p166 = pneg %p165
    // Predicated region
    $region29: #{emb_cross_prob_loss.1} parent=5 // pred_check
      _
    $region30: #{emb_cross_prob_loss.1} parent=5 // pred_check_branch
      %168 = sbr.rel (%p165) target = $region32
    $region31: #{emb_cross_prob_loss.1} parent=5 // pred_region
      %s169 = ssub.s32 %s10, 1
      %s170 = smul.u32 8, %s20
      %p171 = scmp.lt.s32.totalorder %s170, 7
      %s172 = scalar_select %p171, %s170, 7
      %s173 = smul.addr %s172, 8
      %s174 = scalar_lea.vmem %s0, %s173
      %p175 = pneg %p48
      %p176 = pneg %p45
      %s177 = smul.u32 16, %s19
      %p178 = scmp.lt.s32.totalorder %s177, 31
      %s179 = scalar_select %p178, %s177, 31
      %s180 = smul.addr %s179, 8
      %s181 = scalar_lea.vmem %s1, %s180
      %p182 = pneg %p74
      %p183 = pneg %p71
      %p184 = pneg %p95
      %p185 = pneg %p92
      %p186 = pneg %p123
      %p187 = pneg %p120
      %p188 = scmp.lt.s32.totalorder %s20, 0
      %s189 = scalar_select %p188, %s20, 0
      %p190 = scmp.lt.s32.totalorder %s19, 1
      %s191 = scalar_select %p190, %s19, 1
      %s192 = smul.addr %s189, 2
      %s193 = sadd.s32 %s191, %s192
      %s194 = smul.addr %s193, 8
      %s195 = scalar_lea.vmem %s3, %s194
      %s196 = smul.u32 8, %s20
      %p197 = scmp.lt.s32.totalorder %s196, 7
      %s198 = scalar_select %p197, %s196, 7
      %s199 = smul.addr %s198, 8
      %s200 = scalar_lea.vmem %s0, %s199
      %s201 = smul.u32 8, %s20
      %s202 = smul.u32 16, %s19
      %p203 = scmp.lt.s32.totalorder %s202, 31
      %s204 = scalar_select %p203, %s202, 31
      %s205 = smul.addr %s204, 8
      %s206 = scalar_lea.vmem %s1, %s205
      %s207 = smul.u32 16, %s19
      %p208 = scmp.lt.s32.totalorder %s20, 0
      %s209 = scalar_select %p208, %s20, 0
      %p210 = scmp.lt.s32.totalorder %s19, 1
      %s211 = scalar_select %p210, %s19, 1
      %s212 = smul.addr %s209, 2
      %s213 = sadd.s32 %s211, %s212
      %s214 = smul.addr %s213, 8
      %s215 = scalar_lea.vmem %s3, %s214
      %v216 = vld [vmem:[%s200] sm:$0xff]
      %v217 = vld [vmem:[%s200 + $0x8] sm:$0xff]
      %v218 = vld [vmem:[%s200 + $0x10] sm:$0xff]
      %v219 = vld [vmem:[%s200 + $0x18] sm:$0xff]
      %v220 = vld [vmem:[%s200 + $0x20] sm:$0xff]
      %v221 = vld [vmem:[%s200 + $0x28] sm:$0xff]
      %v222 = vld [vmem:[%s200 + $0x30] sm:$0xff]
      %v223 = vld [vmem:[%s200 + $0x38] sm:$0xff]
      %s224 = sld [smem:[#allocation2]]
      %s225 = smul.f32 %s224, 5.0
      %s226 = smul.f32 %s225, %s225
      %s227 = ssub.f32 0.0, %s226
      %v228 = vlaneseq
      %v229 = vand.u32 %v228, 127
      %v230 = vld [vmem:[%s206] sm:$0xff]
      %v231 = vld [vmem:[%s206 + $0x8] sm:$0xff]
      %v232 = vld [vmem:[%s206 + $0x10] sm:$0xff]
      %v233 = vld [vmem:[%s206 + $0x18] sm:$0xff]
      %v234 = vld [vmem:[%s206 + $0x20] sm:$0xff]
      %v235 = vld [vmem:[%s206 + $0x28] sm:$0xff]
      %v236 = vld [vmem:[%s206 + $0x30] sm:$0xff]
      %v237 = vld [vmem:[%s206 + $0x38] sm:$0xff]
      %v238 = vld [vmem:[%s206 + $0x40] sm:$0xff]
      %v239 = vld [vmem:[%s206 + $0x48] sm:$0xff]
      %v240 = vld [vmem:[%s206 + $0x50] sm:$0xff]
      %v241 = vld [vmem:[%s206 + $0x58] sm:$0xff]
      %v242 = vld [vmem:[%s206 + $0x60] sm:$0xff]
      %v243 = vld [vmem:[%s206 + $0x68] sm:$0xff]
      %v244 = vld [vmem:[%s206 + $0x70] sm:$0xff]
      %v245 = vld [vmem:[%s206 + $0x78] sm:$0xff]
      %246 = vmatprep.subr.mxu0 0.0
      %247 = vmatpush1.xpose.msra.mxu0 %v245
      %248 = vmatprep.subr.mxu0 0.0
      %249 = vmatpush1.xpose.msra.mxu0 %v244
      %250 = vmatprep.subr.mxu0 0.0
      %251 = vmatpush1.xpose.msra.mxu0 %v243
      %252 = vmatprep.subr.mxu0 0.0
      %253 = vmatpush1.xpose.msra.mxu0 %v242
      %254 = vmatprep.subr.mxu0 0.0
      %255 = vmatpush1.xpose.msra.mxu0 %v241
      %256 = vmatprep.subr.mxu0 0.0
      %257 = vmatpush1.xpose.msra.mxu0 %v240
      %258 = vmatprep.subr.mxu0 0.0
      %259 = vmatpush1.xpose.msra.mxu0 %v239
      %260 = vmatprep.subr.mxu0 0.0
      %261 = vmatpush1.xpose.msra.mxu0 %v238
      %262 = vmatprep.subr.mxu0 0.0
      %263 = vmatpush1.xpose.msra.mxu0 %v237
      %264 = vmatprep.subr.mxu0 0.0
      %265 = vmatpush1.xpose.msra.mxu0 %v236
      %266 = vmatprep.subr.mxu0 0.0
      %267 = vmatpush1.xpose.msra.mxu0 %v235
      %268 = vmatprep.subr.mxu0 0.0
      %269 = vmatpush1.xpose.msra.mxu0 %v234
      %270 = vmatprep.subr.mxu0 0.0
      %271 = vmatpush1.xpose.msra.mxu0 %v233
      %272 = vmatprep.subr.mxu0 0.0
      %273 = vmatpush1.xpose.msra.mxu0 %v232
      %274 = vmatprep.subr.mxu0 0.0
      %275 = vmatpush1.xpose.msra.mxu0 %v231
      %276 = vmatprep.subr.mxu0 0.0
      %277 = vmatpush1.xpose.msra.mxu0 %v230
      %278 = vmatprep.subr.mxu0 0.0
      %279 = vmatpush2.xpose.msra.mxu0 0.0
      %280 = vmatprep.subr.mxu0 0.0
      %281 = vmatpush2.xpose.msra.mxu0 0.0
      %282 = vmatprep.subr.mxu0 0.0
      %283 = vmatpush2.xpose.msra.mxu0 0.0
      %284 = vmatprep.subr.mxu0 0.0
      %285 = vmatpush2.xpose.msra.mxu0 0.0
      %286 = vmatprep.subr.mxu0 0.0
      %287 = vmatpush2.xpose.msra.mxu0 0.0
      %288 = vmatprep.subr.mxu0 0.0
      %289 = vmatpush2.xpose.msra.mxu0 0.0
      %290 = vmatprep.subr.mxu0 0.0
      %291 = vmatpush2.xpose.msra.mxu0 0.0
      %292 = vmatprep.subr.mxu0 0.0
      %293 = vmatpush2.xpose.msra.mxu0 0.0
      %294 = vmatprep.subr.mxu0 0.0
      %295 = vmatpush2.xpose.msra.mxu0 0.0
      %296 = vmatprep.subr.mxu0 0.0
      %297 = vmatpush2.xpose.msra.mxu0 0.0
      %298 = vmatprep.subr.mxu0 0.0
      %299 = vmatpush2.xpose.msra.mxu0 0.0
      %300 = vmatprep.subr.mxu0 0.0
      %301 = vmatpush2.xpose.msra.mxu0 0.0
      %302 = vmatprep.subr.mxu0 0.0
      %303 = vmatpush2.xpose.msra.mxu0 0.0
      %304 = vmatprep.subr.mxu0 0.0
      %305 = vmatpush2.xpose.msra.mxu0 0.0
      %306 = vmatprep.subr.mxu0 0.0
      %307 = vmatpush2.xpose.msra.mxu0 0.0
      %308 = vmatprep.subr.mxu0 0.0
      %309 = vmatpush2.xpose.msra.mxu0 0.0
      %310 = vmatprep.mubr.f32.mxu0 0.0
      %311 = vmatmul.mubr.f32.gmra.mxu0 %v216
      %v312 = vpop.f32.mrf.mxu0
      %v313 = vadd.f32 0.0, %v312
      %v314 = vpop.f32.mrf.mxu0
      %315 = vmatprep.mubr.f32.mxu0 0.0
      %316 = vmatmul.mubr.f32.gmra.mxu0 %v217
      %v317 = vpop.f32.mrf.mxu0
      %v318 = vadd.f32 0.0, %v317
      %v319 = vpop.f32.mrf.mxu0
      %320 = vmatprep.mubr.f32.mxu0 0.0
      %321 = vmatmul.mubr.f32.gmra.mxu0 %v218
      %v322 = vpop.f32.mrf.mxu0
      %v323 = vadd.f32 0.0, %v322
      %v324 = vpop.f32.mrf.mxu0
      %325 = vmatprep.mubr.f32.mxu0 0.0
      %326 = vmatmul.mubr.f32.gmra.mxu0 %v219
      %v327 = vpop.f32.mrf.mxu0
      %v328 = vadd.f32 0.0, %v327
      %v329 = vpop.f32.mrf.mxu0
      %330 = vmatprep.mubr.f32.mxu0 0.0
      %331 = vmatmul.mubr.f32.gmra.mxu0 %v220
      %v332 = vpop.f32.mrf.mxu0
      %v333 = vadd.f32 0.0, %v332
      %v334 = vpop.f32.mrf.mxu0
      %335 = vmatprep.mubr.f32.mxu0 0.0
      %336 = vmatmul.mubr.f32.gmra.mxu0 %v221
      %v337 = vpop.f32.mrf.mxu0
      %v338 = vadd.f32 0.0, %v337
      %v339 = vpop.f32.mrf.mxu0
      %340 = vmatprep.mubr.f32.mxu0 0.0
      %341 = vmatmul.mubr.f32.gmra.mxu0 %v222
      %v342 = vpop.f32.mrf.mxu0
      %v343 = vadd.f32 0.0, %v342
      %v344 = vpop.f32.mrf.mxu0
      %345 = vmatprep.mubr.f32.mxu0 0.0
      %346 = vmatmul.mubr.f32.gmra.mxu0 %v223
      %v347 = vpop.f32.mrf.mxu0
      %v348 = vadd.f32 0.0, %v347
      %v349 = vpop.f32.mrf.mxu0
      %350 = vdwg.mxu0
      %v351 = vrot.slane %v313, 4
      %v352 = vmin.f32 %v313, %v351
      %v353 = vrot.slane %v352, 2
      %v354 = vmin.f32 %v352, %v353
      %v355 = vrot.slane %v354, 1
      %v356 = vmin.f32 %v354, %v355
      %v357 = vrot.slane %v318, 4
      %v358 = vmin.f32 %v318, %v357
      %v359 = vrot.slane %v358, 2
      %v360 = vmin.f32 %v358, %v359
      %v361 = vrot.slane %v360, 1
      %v362 = vmin.f32 %v360, %v361
      %v363 = vrot.slane %v323, 4
      %v364 = vmin.f32 %v323, %v363
      %v365 = vrot.slane %v364, 2
      %v366 = vmin.f32 %v364, %v365
      %v367 = vrot.slane %v366, 1
      %v368 = vmin.f32 %v366, %v367
      %v369 = vrot.slane %v328, 4
      %v370 = vmin.f32 %v328, %v369
      %v371 = vrot.slane %v370, 2
      %v372 = vmin.f32 %v370, %v371
      %v373 = vrot.slane %v372, 1
      %v374 = vmin.f32 %v372, %v373
      %v375 = vrot.slane %v333, 4
      %v376 = vmin.f32 %v333, %v375
      %v377 = vrot.slane %v376, 2
      %v378 = vmin.f32 %v376, %v377
      %v379 = vrot.slane %v378, 1
      %v380 = vmin.f32 %v378, %v379
      %v381 = vrot.slane %v338, 4
      %v382 = vmin.f32 %v338, %v381
      %v383 = vrot.slane %v382, 2
      %v384 = vmin.f32 %v382, %v383
      %v385 = vrot.slane %v384, 1
      %v386 = vmin.f32 %v384, %v385
      %v387 = vrot.slane %v343, 4
      %v388 = vmin.f32 %v343, %v387
      %v389 = vrot.slane %v388, 2
      %v390 = vmin.f32 %v388, %v389
      %v391 = vrot.slane %v390, 1
      %v392 = vmin.f32 %v390, %v391
      %v393 = vrot.slane %v348, 4
      %v394 = vmin.f32 %v348, %v393
      %v395 = vrot.slane %v394, 2
      %v396 = vmin.f32 %v394, %v395
      %v397 = vrot.slane %v396, 1
      %v398 = vmin.f32 %v396, %v397
      %vm407 = vcmask 1041409
      %v408 = vsel %vm407, %v362, %v356
      %vm409 = vcmask 1042434
      %v410 = vsel %vm409, %v368, %v408
      %vm411 = vcmask 1043459
      %v412 = vsel %vm411, %v374, %v410
      %vm413 = vcmask 1044484
      %v414 = vsel %vm413, %v380, %v412
      %vm415 = vcmask 1045509
      %v416 = vsel %vm415, %v386, %v414
      %vm417 = vcmask 1046534
      %v418 = vsel %vm417, %v392, %v416
      %vm419 = vcmask 1047559
      %v420 = vsel %vm419, %v398, %v418
      %422 = vmin.xlane.f32.xlu0 %v420
      %v423 = vpop.xlane.xlu0 %422
      %v424 = vmax.f32 %v423, 0.0
      %vm425 = vcmp.eq.s32.totalorder %v229, 0
      %v426 = vsel %vm425, 1, 0
      %vm427 = vcmp.eq.s32.totalorder %v426, 1
      %v428 = vsel %vm427, %v424, 0.0
      %v429 = vadd.f32 %v428, 0.0
      %v430 = vstv %s227
      %v431 = vmul.f32 %v429, %v430
      %432 = vst [vmem:[%s215] sm:$0xff] %v431
      %p433 = scmp.lt.s32.totalorder %s20, 0
      %s434 = scalar_select %p433, %s20, 0
      %p435 = scmp.lt.s32.totalorder %s19, 1
      %s436 = scalar_select %p435, %s19, 1
      %s437 = smul.addr %s434, 2
      %s438 = sadd.s32 %s436, %s437
      %s439 = smul.addr %s438, 8
      %s440 = scalar_lea.vmem %s3, %s439
      // Predicated region
      $region33: #{emb_cross_prob_loss.1} parent=31 // pred_check
        %p441 = pneg %p120
      $region34: #{emb_cross_prob_loss.1} parent=31 // pred_check_branch
        %443 = sbr.rel (%p441) target = $region36
      $region35: #{emb_cross_prob_loss.1} parent=31 // pred_region
        _
      $region36: #{emb_cross_prob_loss.1} parent=31 // pred_fallthru
        _
    $region32: #{emb_cross_prob_loss.1} parent=5 // pred_fallthru
      _
    %p444 = scmp.le.s32.totalorder 2, %s10
    // Predicated region
    $region37: #{emb_cross_prob_loss.1} parent=5 // pred_check
      %p445 = pneg %p444
    $region38: #{emb_cross_prob_loss.1} parent=5 // pred_check_branch
      %447 = sbr.rel (%p445) target = $region40
    $region39: #{emb_cross_prob_loss.1} parent=5 // pred_region
      %s448 = ssub.s32 %s10, 2
      // Predicated region
      $region41: #{emb_cross_prob_loss.1} parent=39 // pred_check
        %p449 = pneg %p126
      $region42: #{emb_cross_prob_loss.1} parent=39 // pred_check_branch
        %451 = sbr.rel (%p449) target = $region44
      $region43: #{emb_cross_prob_loss.1} parent=39 // pred_region
        %p452 = scmp.lt.s32.totalorder %s22, 0
        %s453 = scalar_select %p452, %s22, 0
        %p454 = scmp.lt.s32.totalorder %s21, 1
        %s455 = scalar_select %p454, %s21, 1
        %s456 = smul.addr %s453, 2
        %s457 = sadd.s32 %s455, %s456
        %s458 = smul.addr %s457, 8
        %s459 = scalar_lea.vmem %s3, %s458
      $region44: #{emb_cross_prob_loss.1} parent=39 // pred_fallthru
        _
    $region40: #{emb_cross_prob_loss.1} parent=5 // pred_fallthru
      _
  $region6: #{emb_cross_prob_loss.1} parent=0 // loop_footer
    %s14 = sadd.s32 1, %s10
  $region7: #{emb_cross_prob_loss.1} parent=0 // loop_footer_branch
    %9 = sbr.rel target = $region3
  $region8: #{emb_cross_prob_loss.1} parent=0 // loop_exit
    _

</llo_original>
